<compile_context>
chip_gen: v7x
topology: tpu7x:2x2x1
jax: 0.10.0
libtpu: 0.0.40
codegen_flags: <defaults>
</compile_context>

<pallas_src>
import functools

import jax
import jax.numpy as jnp
from jax.experimental import pallas as pl
from jax.experimental.pallas import tpu as pltpu


# ------------------------------- helpers ------------------------------------

_LANE = 128     # lane width: feature dims padded to multiples of this
_SUBLANE = 8    # f32 sublane height
_HEADROOM = 4 * 1024 * 1024   # VMEM left for compiler scratch / semaphores
_MAX_TM = 1024


def _round_up(x: int, m: int) -> int:
    return ((x + m - 1) // m) * m


def _pad_to(a, shape):
    """Zero-pad a 2-D array up to `shape`."""
    pads = [(0, t - s) for s, t in zip(a.shape, shape)]
    if all(p == (0, 0) for p in pads):
        return a
    return jnp.pad(a, pads)


def _vmem_capacity_bytes() -> int:
    """Per-core VMEM capacity, conservative fallback (v7x) if unqueryable."""
    try:
        info = pltpu.get_tpu_info()
        cap = getattr(info, "vmem_capacity_bytes", None)
        if cap:
            return int(cap)
    except Exception:
        pass
    return 64 * 1024 * 1024


def _resident_spec(shape):
    """BlockSpec for an operand kept fully resident across the batch grid."""
    index_map = lambda i: (0,) * len(shape)
    try:
        # Index map never changes -> a second buffer is never used; single-buffer.
        return pl.BlockSpec(shape, index_map, pipeline_mode=pl.Buffered(1))
    except Exception:
        return pl.BlockSpec(shape, index_map)


def _pick_tiling(batch: int, k_pad: int, n_pad: int, h_pad: int,
                 weight_bytes: int):
    """Choose (tm, b_pad, vmem_limit) from a VMEM budget equation."""
    vmem_limit = int(_vmem_capacity_bytes() * 0.8)

    # Per batch-row VMEM: double-buffered x and out tiles + f32 hidden scratch.
    per_row = 4 * (2 * (k_pad + n_pad) + h_pad)
    budget = max(vmem_limit - weight_bytes - _HEADROOM, 0)
    tm_max = max((budget // per_row) // _SUBLANE * _SUBLANE, _SUBLANE)
    tm_max = min(tm_max, _MAX_TM)

    b_pad = _round_up(batch, _SUBLANE)

    def largest_divisor_tile(cap):
        start = max(min(cap, b_pad) // _SUBLANE * _SUBLANE, _SUBLANE)
        for t in range(start, _SUBLANE - 1, -_SUBLANE):
            if b_pad % t == 0:
                return t
        return _SUBLANE

    tm = largest_divisor_tile(tm_max)

    # Megacore (v7x has 2 TCs): give the parallel axis >= 2 steps when there is
    # enough work to amortize the extra grid-step overhead.
    if b_pad // tm == 1 and b_pad >= 256:
        tm = largest_divisor_tile(b_pad // 2)

    return tm, b_pad, vmem_limit


# ----------------------------- Pallas kernels ------------------------------

def _linear_head_kernel(x_ref, w_ref, b_ref, o_ref):
    # y = x @ W + b          (single Linear layer)
    y = jnp.dot(x_ref[...], w_ref[...], preferred_element_type=jnp.float32)
    o_ref[...] = (y + b_ref[...]).astype(o_ref.dtype)


def _nonlinear_head_kernel(x_ref, w1_ref, b1_ref, w2_ref, b2_ref, o_ref, h_scratch):
    # h = relu(x @ W1 + b1)  -> VMEM scratch (keeps regalloc out of spill land)
    h = jnp.dot(x_ref[...], w1_ref[...], preferred_element_type=jnp.float32)
    h_scratch[...] = jnp.maximum(h + b1_ref[...], 0.0)
    # y = h @ W2 + b2
    y = jnp.dot(h_scratch[...], w2_ref[...], preferred_element_type=jnp.float32)
    o_ref[...] = (y + b2_ref[...]).astype(o_ref.dtype)


# ------------------------------- wrappers ----------------------------------

def init_head_params(key, input_dim, hidden_dim, output_dim, flag):
    """Parameter init mirroring Head.__init__ / Head.initilize.

    Linear weights ~ N(0, 0.01); biases keep PyTorch's default
    U(-1/sqrt(fan_in), 1/sqrt(fan_in)).  Weights stored as (in, out).
    """
    k1, k2, k3, k4 = jax.random.split(key, 4)
    if flag == "linear":
        w1 = 0.01 * jax.random.normal(k1, (input_dim, output_dim), jnp.float32)
        bb = 1.0 / jnp.sqrt(jnp.float32(input_dim))
        b1 = jax.random.uniform(k2, (1, output_dim), jnp.float32, -bb, bb)
        return {"w1": w1, "b1": b1}
    elif flag == "nonlinear":
        w1 = 0.01 * jax.random.normal(k1, (input_dim, hidden_dim), jnp.float32)
        bb1 = 1.0 / jnp.sqrt(jnp.float32(input_dim))
        b1 = jax.random.uniform(k2, (1, hidden_dim), jnp.float32, -bb1, bb1)
        w2 = 0.01 * jax.random.normal(k3, (hidden_dim, output_dim), jnp.float32)
        bb2 = 1.0 / jnp.sqrt(jnp.float32(hidden_dim))
        b2 = jax.random.uniform(k4, (1, output_dim), jnp.float32, -bb2, bb2)
        return {"w1": w1, "b1": b1, "w2": w2, "b2": b2}
    else:
        raise NotImplementedError("not option")


def prepare_head_params(params, flag):
    """Pad weights/biases to lane-dense (multiple-of-128) shapes ONCE.

    Returns (padded_params, meta) where meta holds plain-int original dims.
    Doing this outside the per-call forward avoids re-reading and re-writing
    every weight from HBM on each forward pass.
    """
    if flag == "linear":
        w1, b1 = params["w1"], params["b1"]
        in_dim, out_dim = w1.shape
        k_pad = _round_up(in_dim, _LANE)
        n_pad = _round_up(out_dim, _LANE)
        padded = {
            "w1": _pad_to(w1, (k_pad, n_pad)),
            "b1": _pad_to(b1, (1, n_pad)),
        }
        meta = {"in_dim": in_dim, "out_dim": out_dim}
        return padded, meta
    elif flag == "nonlinear":
        w1, b1, w2, b2 = params["w1"], params["b1"], params["w2"], params["b2"]
        in_dim, hidden_dim = w1.shape
        out_dim = w2.shape[1]
        k_pad = _round_up(in_dim, _LANE)
        h_pad = _round_up(hidden_dim, _LANE)
        n_pad = _round_up(out_dim, _LANE)
        # Zero-padded hidden columns: relu(x@0 + 0) == 0 -> no effect on layer 2.
        padded = {
            "w1": _pad_to(w1, (k_pad, h_pad)),
            "b1": _pad_to(b1, (1, h_pad)),
            "w2": _pad_to(w2, (h_pad, n_pad)),
            "b2": _pad_to(b2, (1, n_pad)),
        }
        meta = {"in_dim": in_dim, "out_dim": out_dim}
        return padded, meta
    else:
        raise NotImplementedError("not option")


@functools.partial(jax.jit, static_argnames=("flag", "out_dim"))
def _head_forward_padded(x, padded, flag, out_dim):
    batch, in_dim = x.shape

    if flag == "linear":
        w1, b1 = padded["w1"], padded["b1"]
        k_pad, n_pad = w1.shape
        h_pad = 0
        weight_bytes = 4 * (k_pad * n_pad + n_pad)
    else:
        w1, b1, w2, b2 = padded["w1"], padded["b1"], padded["w2"], padded["b2"]
        k_pad, h_pad = w1.shape
        n_pad = w2.shape[1]
        weight_bytes = 4 * (k_pad * h_pad + h_pad + h_pad * n_pad + n_pad)

    tm, b_pad, vmem_limit = _pick_tiling(batch, k_pad, n_pad, h_pad, weight_bytes)
    grid = (b_pad // tm,)

    x_p = _pad_to(x, (b_pad, k_pad))
    x_spec = pl.BlockSpec((tm, k_pad), lambda i: (i, 0))
    out_spec = pl.BlockSpec((tm, n_pad), lambda i: (i, 0))

    compiler_params = pltpu.CompilerParams(
        dimension_semantics=("parallel",),   # megacore sharding on v7x
        vmem_limit_bytes=vmem_limit,
    )

    if flag == "linear":
        cost = pl.CostEstimate(
            flops=2 * b_pad * k_pad * n_pad,
            transcendentals=0,
            bytes_accessed=4 * (b_pad * k_pad + k_pad * n_pad + n_pad
                                + b_pad * n_pad),
        )
        out_p = pl.pallas_call(
            _linear_head_kernel,
            out_shape=jax.ShapeDtypeStruct((b_pad, n_pad), jnp.float32),
            grid=grid,
            in_specs=[x_spec, _resident_spec(w1.shape), _resident_spec(b1.shape)],
            out_specs=out_spec,
            compiler_params=compiler_params,
            cost_estimate=cost,
        )(x_p, w1, b1)
    else:
        cost = pl.CostEstimate(
            flops=2 * b_pad * k_pad * h_pad + 2 * b_pad * h_pad * n_pad,
            transcendentals=0,
            bytes_accessed=4 * (b_pad * k_pad + k_pad * h_pad + h_pad
                                + h_pad * n_pad + n_pad + b_pad * n_pad),
        )
        out_p = pl.pallas_call(
            _nonlinear_head_kernel,
            out_shape=jax.ShapeDtypeStruct((b_pad, n_pad), jnp.float32),
            grid=grid,
            in_specs=[x_spec,
                      _resident_spec(w1.shape), _resident_spec(b1.shape),
                      _resident_spec(w2.shape), _resident_spec(b2.shape)],
            out_specs=out_spec,
            scratch_shapes=[pltpu.VMEM((tm, h_pad), jnp.float32)],
            compiler_params=compiler_params,
            cost_estimate=cost,
        )(x_p, w1, b1, w2, b2)

    return out_p[:batch, :out_dim]


def head_forward(x, prepared, flag):
    """Head forward pass.  `prepared` = prepare_head_params(params, flag)."""
    padded, meta = prepared
    return _head_forward_padded(x, padded, flag, meta["out_dim"])


# --------------------------------- main -------------------------------------

if __name__ == "__main__":
    key = jax.random.PRNGKey(0)
    kx, kp_lin, kp_non = jax.random.split(key, 3)

    batch, input_dim, hidden_dim, output_dim = 8, 32, 64, 16
    x = jax.random.normal(kx, (batch, input_dim), jnp.float32)

    # --- linear head ---
    params_lin = init_head_params(kp_lin, input_dim, hidden_dim, output_dim, "linear")
    prepared_lin = prepare_head_params(params_lin, "linear")
    y_lin = jax.block_until_ready(head_forward(x, prepared_lin, "linear"))
    ref_lin = x @ params_lin["w1"] + params_lin["b1"]
    assert y_lin.shape == (batch, output_dim)
    assert jnp.allclose(y_lin, ref_lin, atol=1e-5, rtol=1e-5), "linear head mismatch"

    # --- nonlinear head ---
    params_non = init_head_params(kp_non, input_dim, hidden_dim, output_dim, "nonlinear")
    prepared_non = prepare_head_params(params_non, "nonlinear")
    y_non = jax.block_until_ready(head_forward(x, prepared_non, "nonlinear"))
    h_ref = jnp.maximum(x @ params_non["w1"] + params_non["b1"], 0.0)
    ref_non = h_ref @ params_non["w2"] + params_non["b2"]
    assert y_non.shape == (batch, output_dim)
    assert jnp.allclose(y_non, ref_non, atol=1e-5, rtol=1e-5), "nonlinear head mismatch"

    print("KERNEL_OK")
</pallas_src>

<mosaic_0001>
module attributes {stable_mosaic.version = 11 : i64} {
  func.func @_linear_head_kernel(%arg0: i32, %arg1: memref<8x128xf32, #tpu.memory_space<vmem>>, %arg2: memref<128x128xf32, #tpu.memory_space<vmem>>, %arg3: memref<1x128xf32, #tpu.memory_space<vmem>>, %arg4: memref<8x128xf32, #tpu.memory_space<vmem>>) attributes {dimension_semantics = [#tpu.dimension_semantics<parallel>], iteration_bounds = array<i64: 1>, scalar_prefetch = 0 : i64, scratch_operands = 0 : i64, tpu.core_type = #tpu.core_type<tc>, window_params = [{transform_indices = @transform_0, window_bounds = array<i64: 8, 128>}, {pipeline_mode = #tpu.pipeline_mode<synchronous>, transform_indices = @transform_1, window_bounds = array<i64: 128, 128>}, {pipeline_mode = #tpu.pipeline_mode<synchronous>, transform_indices = @transform_2, window_bounds = array<i64: 1, 128>}, {transform_indices = @transform_3, window_bounds = array<i64: 8, 128>}]} {
    %c0 = arith.constant 0 : index
    %c0_0 = arith.constant 0 : index
    %0 = vector.load %arg1[%c0, %c0_0] : memref<8x128xf32, #tpu.memory_space<vmem>>, vector<8x128xf32>
    %c0_1 = arith.constant 0 : index
    %c0_2 = arith.constant 0 : index
    %1 = vector.load %arg2[%c0_1, %c0_2] : memref<128x128xf32, #tpu.memory_space<vmem>>, vector<128x128xf32>
    %cst = arith.constant dense<0.000000e+00> : vector<8x128xf32>
    %2 = tpu.matmul %0, %1, %cst {dimension_numbers = #tpu.dot_dimension_numbers<[1], [0], [0], [1], [0, 0, 1, 1], [], []>} : vector<8x128xf32>, vector<128x128xf32>, vector<8x128xf32> -> vector<8x128xf32>
    %c0_3 = arith.constant 0 : index
    %c0_4 = arith.constant 0 : index
    %3 = vector.load %arg3[%c0_3, %c0_4] : memref<1x128xf32, #tpu.memory_space<vmem>>, vector<1x128xf32>
    %4 = vector.broadcast %3 : vector<1x128xf32> to vector<8x128xf32>
    %5 = arith.addf %2, %4 : vector<8x128xf32>
    %c0_5 = arith.constant 0 : index
    %c0_6 = arith.constant 0 : index
    %6 = vector.load %arg4[%c0_5, %c0_6] : memref<8x128xf32, #tpu.memory_space<vmem>>, vector<8x128xf32>
    tpu.vector_store %arg4[%c0_5, %c0_6], %5 {strides = array<i32>} : memref<8x128xf32, #tpu.memory_space<vmem>>, vector<8x128xf32>,
    return
  }
  func.func @transform_0(%arg0: i32) -> (i32, i32) {
    %c0_i32 = arith.constant 0 : i32
    %c0_i32_0 = arith.constant 0 : i32
    return %arg0, %c0_i32 : i32, i32
  }
  func.func @transform_1(%arg0: i32) -> (i32, i32) {
    %c0_i32 = arith.constant 0 : i32
    %c0_i32_0 = arith.constant 0 : i32
    %c0_i32_1 = arith.constant 0 : i32
    return %c0_i32, %c0_i32_0 : i32, i32
  }
  func.func @transform_2(%arg0: i32) -> (i32, i32) {
    %c0_i32 = arith.constant 0 : i32
    %c0_i32_0 = arith.constant 0 : i32
    %c0_i32_1 = arith.constant 0 : i32
    return %c0_i32, %c0_i32_0 : i32, i32
  }
  func.func @transform_3(%arg0: i32) -> (i32, i32) {
    %c0_i32 = arith.constant 0 : i32
    %c0_i32_0 = arith.constant 0 : i32
    return %arg0, %c0_i32 : i32, i32
  }
}

</mosaic_0001>

<llo_original>
// kernel: _head_forward_padded.1
$region0: #{_head_forward_padded.1}
  #allocation0 [shape = 'u32[]', space=smem, size = 0x4, offset = 0x4, fixed_abs, tag = 'smem constant byte address 0x4 - core index']
  #allocation1 [shape = 'u32[144,128]{1,0:T(1,128)}', space=vmem, size = 0x12000, scoped, tag = 'internal scratch']
  %s0 = inlined_call_operand.vmem [shape: f32[8,128], index: 0, kind: input, shape index: {}]
  %s1 = inlined_call_operand.hbm [shape: f32[128,128], index: 1, kind: input, shape index: {}]
  %s2 = inlined_call_operand.vmem [shape: f32[1,128], index: 2, kind: input, shape index: {}]
  %s3 = inlined_call_operand.hbm [shape: f32[8,128], index: 3, kind: output, shape index: {}]
  %s4 = sld [smem:[#allocation0]]
  $region26: #{_head_forward_padded.1} parent=0
    _
  %s6 = ssub.s32 1, %s4
  %s7 = scalar_select 0, %s6, %s4
  $region1: #{_head_forward_padded.1} parent=0
    #allocation2 [shape = 'u8[65536]{0}', space=vmem, size = 0x10000, scoped, tag = 'input window, operand 1, single buffered']
    #allocation3 [shape = 's32[1]{0}', space=sflag, size = 0x4, scoped, tag = 'scoped memory for _head_forward_padded.1']
    #allocation4 [shape = 's32[1]{0}', space=sflag, size = 0x4, scoped, tag = 'scoped memory for _head_forward_padded.1']
    #allocation5 [shape = 'u8[4096]{0}', space=vmem, size = 0x1000, scoped, tag = 'output window, operand 0, single buffered']
    %8 = vsyncpa [#allocation3], 0
    %9 = vsyncpa [#allocation4], 0
    // Predicated region
    $region2: #{_head_forward_padded.1} parent=1 // pred_check
      _
    $region3: #{_head_forward_padded.1} parent=1 // pred_check_branch
      %11 = sbr.rel (0) target = $region5
    $region4: #{_head_forward_padded.1} parent=1 // pred_region
      _
    $region5: #{_head_forward_padded.1} parent=1 // pred_fallthru
      _
    // Predicated region
    $region6: #{_head_forward_padded.1} parent=1 // pred_check
      _
    $region7: #{_head_forward_padded.1} parent=1 // pred_check_branch
      %13 = sbr.rel (0) target = $region9
    $region8: #{_head_forward_padded.1} parent=1 // pred_region
      %s15 = ssub.s32 2048, 2048
      %16 = vsyncadd [#allocation3], %s15
      %s17 = sshll.u32 [#allocation2], 4
      %s18 = int_to_ptr.vmem [resolvable:$true] %s17
      %23 = dma.hbm_to_vmem [thread:$0]  %s1, 2048, %s18, [#allocation3], 128, 128, 8
    $region9: #{_head_forward_padded.1} parent=1 // pred_fallthru
      _
    // Predicated region
    $region10: #{_head_forward_padded.1} parent=1 // pred_check
      _
    $region11: #{_head_forward_padded.1} parent=1 // pred_check_branch
      %25 = sbr.rel (0) target = $region13
    $region12: #{_head_forward_padded.1} parent=1 // pred_region
      _
    $region13: #{_head_forward_padded.1} parent=1 // pred_fallthru
      _
    // Predicated region
    $region14: #{_head_forward_padded.1} parent=1 // pred_check
      _
    $region15: #{_head_forward_padded.1} parent=1 // pred_check_branch
      %27 = sbr.rel (0) target = $region17
    $region16: #{_head_forward_padded.1} parent=1 // pred_region
      %28 = dma.done [#allocation3], 2048
    $region17: #{_head_forward_padded.1} parent=1 // pred_fallthru
      _
    %v29 = vld [vmem:[%s0] sm:$0xff]
    %v30 = vld [vmem:[#allocation2] sm:$0xff]
    %v31 = vld [vmem:[#allocation2 + $0x8] sm:$0xff]
    %v32 = vld [vmem:[#allocation2 + $0x10] sm:$0xff]
    %v33 = vld [vmem:[#allocation2 + $0x18] sm:$0xff]
    %v34 = vld [vmem:[#allocation2 + $0x20] sm:$0xff]
    %v35 = vld [vmem:[#allocation2 + $0x28] sm:$0xff]
    %v36 = vld [vmem:[#allocation2 + $0x30] sm:$0xff]
    %v37 = vld [vmem:[#allocation2 + $0x38] sm:$0xff]
    %v38 = vld [vmem:[#allocation2 + $0x40] sm:$0xff]
    %v39 = vld [vmem:[#allocation2 + $0x48] sm:$0xff]
    %v40 = vld [vmem:[#allocation2 + $0x50] sm:$0xff]
    %v41 = vld [vmem:[#allocation2 + $0x58] sm:$0xff]
    %v42 = vld [vmem:[#allocation2 + $0x60] sm:$0xff]
    %v43 = vld [vmem:[#allocation2 + $0x68] sm:$0xff]
    %v44 = vld [vmem:[#allocation2 + $0x70] sm:$0xff]
    %v45 = vld [vmem:[#allocation2 + $0x78] sm:$0xff]
    %v46 = vld [vmem:[%s2] sm:$0x1]
    %v48 = vlaneseq
    %v49 = vshrl.u32 %v48, 7
    %v50 = vsub.s32 0, %v49
    %v51 = vrot.slane %v46, %v50
    %53 = vmatprep.subr.mxu0 0.0
    %54 = vmatpush1.msra.mxu0 %v30
    %55 = vmatprep.subr.mxu0 0.0
    %56 = vmatpush1.msra.mxu0 %v31
    %57 = vmatprep.subr.mxu0 0.0
    %58 = vmatpush1.msra.mxu0 %v32
    %59 = vmatprep.subr.mxu0 0.0
    %60 = vmatpush1.msra.mxu0 %v33
    %61 = vmatprep.subr.mxu0 0.0
    %62 = vmatpush1.msra.mxu0 %v34
    %63 = vmatprep.subr.mxu0 0.0
    %64 = vmatpush1.msra.mxu0 %v35
    %65 = vmatprep.subr.mxu0 0.0
    %66 = vmatpush1.msra.mxu0 %v36
    %67 = vmatprep.subr.mxu0 0.0
    %68 = vmatpush1.msra.mxu0 %v37
    %69 = vmatprep.subr.mxu0 0.0
    %70 = vmatpush1.msra.mxu0 %v38
    %71 = vmatprep.subr.mxu0 0.0
    %72 = vmatpush1.msra.mxu0 %v39
    %73 = vmatprep.subr.mxu0 0.0
    %74 = vmatpush1.msra.mxu0 %v40
    %75 = vmatprep.subr.mxu0 0.0
    %76 = vmatpush1.msra.mxu0 %v41
    %77 = vmatprep.subr.mxu0 0.0
    %78 = vmatpush1.msra.mxu0 %v42
    %79 = vmatprep.subr.mxu0 0.0
    %80 = vmatpush1.msra.mxu0 %v43
    %81 = vmatprep.subr.mxu0 0.0
    %82 = vmatpush1.msra.mxu0 %v44
    %83 = vmatprep.subr.mxu0 0.0
    %84 = vmatpush1.msra.mxu0 %v45
    %85 = vmatprep.subr.mxu0 0.0
    %86 = vmatpush1.msra.mxu0 0.0
    %87 = vmatprep.subr.mxu0 0.0
    %88 = vmatpush1.msra.mxu0 0.0
    %89 = vmatprep.subr.mxu0 0.0
    %90 = vmatpush1.msra.mxu0 0.0
    %91 = vmatprep.subr.mxu0 0.0
    %92 = vmatpush1.msra.mxu0 0.0
    %93 = vmatprep.subr.mxu0 0.0
    %94 = vmatpush1.msra.mxu0 0.0
    %95 = vmatprep.subr.mxu0 0.0
    %96 = vmatpush1.msra.mxu0 0.0
    %97 = vmatprep.subr.mxu0 0.0
    %98 = vmatpush1.msra.mxu0 0.0
    %99 = vmatprep.subr.mxu0 0.0
    %100 = vmatpush1.msra.mxu0 0.0
    %101 = vmatprep.subr.mxu0 0.0
    %102 = vmatpush1.msra.mxu0 0.0
    %103 = vmatprep.subr.mxu0 0.0
    %104 = vmatpush1.msra.mxu0 0.0
    %105 = vmatprep.subr.mxu0 0.0
    %106 = vmatpush1.msra.mxu0 0.0
    %107 = vmatprep.subr.mxu0 0.0
    %108 = vmatpush1.msra.mxu0 0.0
    %109 = vmatprep.subr.mxu0 0.0
    %110 = vmatpush1.msra.mxu0 0.0
    %111 = vmatprep.subr.mxu0 0.0
    %112 = vmatpush1.msra.mxu0 0.0
    %113 = vmatprep.subr.mxu0 0.0
    %114 = vmatpush1.msra.mxu0 0.0
    %115 = vmatprep.subr.mxu0 0.0
    %116 = vmatpush1.msra.mxu0 0.0
    %117 = vmatprep.mubr.f32.mxu0 0.0
    %118 = vmatmul.mubr.f32.gmra.mrb[0].mxu0 %v29
    %v119 = vpop.f32.mrb[0].mxu0
    %v120 = vadd.f32 %v51, %v119
    %v121 = vpop.f32.mrb[0].mxu0
    %122 = vdwg.mxu0
    %123 = vst [vmem:[#allocation5] sm:$0xff] %v120
    // Predicated region
    $region18: #{_head_forward_padded.1} parent=1 // pred_check
      _
    $region19: #{_head_forward_padded.1} parent=1 // pred_check_branch
      %125 = sbr.rel (0) target = $region21
    $region20: #{_head_forward_padded.1} parent=1 // pred_region
      %s127 = ssub.s32 128, 128
      %128 = vsyncadd [#allocation4], %s127
      %s130 = sshll.u32 [#allocation5], 4
      %s131 = int_to_ptr.vmem [resolvable:$true] %s130
      %133 = dma.vmem_to_hbm [thread:$0]  %s131, 128, %s3, [#allocation4]
    $region21: #{_head_forward_padded.1} parent=1 // pred_fallthru
      _
    // Predicated region
    $region22: #{_head_forward_padded.1} parent=1 // pred_check
      _
    $region23: #{_head_forward_padded.1} parent=1 // pred_check_branch
      %135 = sbr.rel (0) target = $region25
    $region24: #{_head_forward_padded.1} parent=1 // pred_region
      %136 = dma.done [#allocation4], 128
    $region25: #{_head_forward_padded.1} parent=1 // pred_fallthru
      _
    %137 = vsyncpa [#allocation3], 1
    %138 = vsyncpa [#allocation4], 1

</llo_original>
